<compile_context>
chip_gen: v6e
topology: v6e:2x2x1
jax: 0.10.0
libtpu: 0.0.40
codegen_flags: <defaults>
</compile_context>

<pallas_src>
import functools

import jax
import jax.numpy as jnp
from jax import lax
from jax.experimental import pallas as pl
from jax.experimental.pallas import tpu as pltpu


# ------------------------- Pallas kernel -------------------------

def _mean_layernorm_kernel(x_ref, gamma_ref, beta_ref, o_ref, *, eps):
    # x_ref: (TB, N, F); gamma_ref/beta_ref: (1, F); o_ref: (TB, F)
    x = x_ref[...].astype(jnp.float32)
    m = jnp.mean(x, axis=-2)                                    # mean over dim=-2 -> (TB, F)
    mu = jnp.mean(m, axis=-1, keepdims=True)                    # LayerNorm stats over features
    var = jnp.mean(jnp.square(m - mu), axis=-1, keepdims=True)  # biased variance (PyTorch)
    inv = lax.rsqrt(var + eps)                                  # EUP, off the VALU slots
    y = (m - mu) * inv * gamma_ref[...] + beta_ref[...]
    o_ref[...] = y.astype(o_ref.dtype)


# ------------------------- wrapper -------------------------

def _pick_tile_b(B, N, F, itemsize):
    """Largest batch tile whose x block stays around ~4 MiB.

    Per-grid-step overhead (~0.35 us) dominates tiny blocks, so we grow the
    block as far as a conservative VMEM budget (double-buffered in + out on a
    64 MiB v7x part) allows.  Small inputs collapse to a single block (grid=1).
    """
    target_bytes = 4 * 1024 * 1024
    rows = max(1, target_bytes // max(1, N * F * itemsize))
    if rows >= B:
        return B  # whole array is one block
    # When tiling, the (tile_b, F) output block's second-to-last dim must be a
    # multiple of 8 (sublane constraint) unless it equals the full batch extent.
    return max(8, (rows // 8) * 8)


@functools.partial(jax.jit, static_argnames=("eps",))
def geo_encoder_forward(x, gamma, beta, *, eps=1e-5):
    """x: (B, N, F) float; gamma/beta: (F,). Returns (B, F) = LayerNorm(mean(x, -2))."""
    B, N, F = x.shape
    gamma2 = gamma.reshape(1, F).astype(jnp.float32)
    beta2 = beta.reshape(1, F).astype(jnp.float32)

    tile_b = _pick_tile_b(B, N, F, x.dtype.itemsize)
    grid = (pl.cdiv(B, tile_b),)

    kernel = functools.partial(_mean_layernorm_kernel, eps=eps)
    return pl.pallas_call(
        kernel,
        out_shape=jax.ShapeDtypeStruct((B, F), x.dtype),
        grid=grid,
        in_specs=[
            pl.BlockSpec((tile_b, N, F), lambda i: (i, 0, 0)),
            pl.BlockSpec((1, F), lambda i: (0, 0)),
            pl.BlockSpec((1, F), lambda i: (0, 0)),
        ],
        out_specs=pl.BlockSpec((tile_b, F), lambda i: (i, 0)),
        compiler_params=pltpu.CompilerParams(
            dimension_semantics=("parallel",),   # rows are independent -> megacore on v7x
        ),
    )(x, gamma2, beta2)


# ------------------------- demo / check -------------------------

if __name__ == "__main__":
    batch, points, features = 2, 8, 32

    key = jax.random.PRNGKey(0)
    x = jax.random.normal(key, (batch, points, features), dtype=jnp.float32)
    gamma = jnp.ones((features,), dtype=jnp.float32)   # nn.LayerNorm default weight
    beta = jnp.zeros((features,), dtype=jnp.float32)   # nn.LayerNorm default bias

    # TODO(synk): the `clones(layer, depth)` encoder sub-layer stack is not defined
    # in the provided spec; x would be passed through those layers here before the
    # fused mean(dim=-2) + LayerNorm tail implemented by the Pallas kernel.

    out = geo_encoder_forward(x, gamma, beta)
    out = jax.block_until_ready(out)

    # pure-JAX reference for the same semantics
    m = x.mean(axis=-2)
    mu = m.mean(axis=-1, keepdims=True)
    var = jnp.mean((m - mu) ** 2, axis=-1, keepdims=True)
    ref = (m - mu) / jnp.sqrt(var + 1e-5) * gamma + beta

    assert out.shape == (batch, features) and out.dtype == x.dtype
    assert jnp.allclose(out, ref, atol=1e-5, rtol=1e-5)

    print("KERNEL_OK")
</pallas_src>

<mosaic_0001>
module attributes {stable_mosaic.version = 11 : i64} {
  func.func @_mean_layernorm_kernel(%arg0: i32, %arg1: memref<2x8x32xf32, #tpu.memory_space<vmem>>, %arg2: memref<1x32xf32, #tpu.memory_space<vmem>>, %arg3: memref<1x32xf32, #tpu.memory_space<vmem>>, %arg4: memref<2x32xf32, #tpu.memory_space<vmem>>) attributes {dimension_semantics = [#tpu.dimension_semantics<parallel>], iteration_bounds = array<i64: 1>, scalar_prefetch = 0 : i64, scratch_operands = 0 : i64, tpu.core_type = #tpu.core_type<tc>, window_params = [{transform_indices = @transform_0, window_bounds = array<i64: 2, 8, 32>}, {pipeline_mode = #tpu.pipeline_mode<synchronous>, transform_indices = @transform_1, window_bounds = array<i64: 1, 32>}, {pipeline_mode = #tpu.pipeline_mode<synchronous>, transform_indices = @transform_2, window_bounds = array<i64: 1, 32>}, {transform_indices = @transform_3, window_bounds = array<i64: 2, 32>}]} {
    %c0 = arith.constant 0 : index
    %c0_0 = arith.constant 0 : index
    %c0_1 = arith.constant 0 : index
    %0 = vector.load %arg1[%c0, %c0_0, %c0_1] : memref<2x8x32xf32, #tpu.memory_space<vmem>>, vector<2x8x32xf32>
    %cst = arith.constant dense<0.000000e+00> : vector<2x32xf32>
    %1 = vector.multi_reduction <add>, %0, %cst [1] : vector<2x8x32xf32> to vector<2x32xf32>
    %cst_2 = arith.constant 8.000000e+00 : f32
    %2 = vector.broadcast %cst_2 : f32 to vector<2x32xf32>
    %3 = arith.divf %1, %2 : vector<2x32xf32>
    %cst_3 = arith.constant dense<0.000000e+00> : vector<2xf32>
    %4 = vector.multi_reduction <add>, %3, %cst_3 [1] : vector<2x32xf32> to vector<2xf32>
    %5 = vector.shape_cast %4 : vector<2xf32> to vector<2x1xf32>
    %cst_4 = arith.constant 3.200000e+01 : f32
    %6 = vector.broadcast %cst_4 : f32 to vector<2x1xf32>
    %7 = arith.divf %5, %6 : vector<2x1xf32>
    %8 = vector.broadcast %7 : vector<2x1xf32> to vector<2x32xf32>
    %9 = arith.subf %3, %8 : vector<2x32xf32>
    %10 = arith.mulf %9, %9 : vector<2x32xf32>
    %cst_5 = arith.constant dense<0.000000e+00> : vector<2xf32>
    %11 = vector.multi_reduction <add>, %10, %cst_5 [1] : vector<2x32xf32> to vector<2xf32>
    %12 = vector.shape_cast %11 : vector<2xf32> to vector<2x1xf32>
    %cst_6 = arith.constant 3.200000e+01 : f32
    %13 = vector.broadcast %cst_6 : f32 to vector<2x1xf32>
    %14 = arith.divf %12, %13 : vector<2x1xf32>
    %cst_7 = arith.constant 9.99999974E-6 : f32
    %15 = vector.broadcast %cst_7 : f32 to vector<2x1xf32>
    %16 = arith.addf %14, %15 : vector<2x1xf32>
    %17 = math.rsqrt %16 : vector<2x1xf32>
    %18 = vector.broadcast %7 : vector<2x1xf32> to vector<2x32xf32>
    %19 = arith.subf %3, %18 : vector<2x32xf32>
    %20 = vector.broadcast %17 : vector<2x1xf32> to vector<2x32xf32>
    %21 = arith.mulf %19, %20 : vector<2x32xf32>
    %c0_8 = arith.constant 0 : index
    %c0_9 = arith.constant 0 : index
    %22 = vector.load %arg2[%c0_8, %c0_9] : memref<1x32xf32, #tpu.memory_space<vmem>>, vector<1x32xf32>
    %23 = vector.broadcast %22 : vector<1x32xf32> to vector<2x32xf32>
    %24 = arith.mulf %21, %23 : vector<2x32xf32>
    %c0_10 = arith.constant 0 : index
    %c0_11 = arith.constant 0 : index
    %25 = vector.load %arg3[%c0_10, %c0_11] : memref<1x32xf32, #tpu.memory_space<vmem>>, vector<1x32xf32>
    %26 = vector.broadcast %25 : vector<1x32xf32> to vector<2x32xf32>
    %27 = arith.addf %24, %26 : vector<2x32xf32>
    %c0_12 = arith.constant 0 : index
    %c0_13 = arith.constant 0 : index
    %28 = vector.load %arg4[%c0_12, %c0_13] : memref<2x32xf32, #tpu.memory_space<vmem>>, vector<2x32xf32>
    tpu.vector_store %arg4[%c0_12, %c0_13], %27 {strides = array<i32>} : memref<2x32xf32, #tpu.memory_space<vmem>>, vector<2x32xf32>,
    return
  }
  func.func @transform_0(%arg0: i32) -> (i32, i32, i32) {
    %c0_i32 = arith.constant 0 : i32
    %c0_i32_0 = arith.constant 0 : i32
    %c0_i32_1 = arith.constant 0 : i32
    return %arg0, %c0_i32, %c0_i32_0 : i32, i32, i32
  }
  func.func @transform_1(%arg0: i32) -> (i32, i32) {
    %c0_i32 = arith.constant 0 : i32
    %c0_i32_0 = arith.constant 0 : i32
    %c0_i32_1 = arith.constant 0 : i32
    return %c0_i32, %c0_i32_0 : i32, i32
  }
  func.func @transform_2(%arg0: i32) -> (i32, i32) {
    %c0_i32 = arith.constant 0 : i32
    %c0_i32_0 = arith.constant 0 : i32
    %c0_i32_1 = arith.constant 0 : i32
    return %c0_i32, %c0_i32_0 : i32, i32
  }
  func.func @transform_3(%arg0: i32) -> (i32, i32) {
    %c0_i32 = arith.constant 0 : i32
    %c0_i32_0 = arith.constant 0 : i32
    return %arg0, %c0_i32 : i32, i32
  }
}

</mosaic_0001>

<llo_original>
// kernel: geo_encoder_forward.1
$region0: #{geo_encoder_forward.1}
  #allocation0 [shape = 'u32[]', space=smem, size = 0x4, offset = 0x4, fixed_abs, tag = 'smem constant byte address 0x4 - core index']
  #allocation1 [shape = 'u32[144,128]{1,0:T(1,128)}', space=vmem, size = 0x12000, scoped, tag = 'internal scratch']
  %s0 = inlined_call_operand.hbm [shape: f32[2,8,32], index: 0, kind: input, shape index: {}]
  %s1 = inlined_call_operand.vmem [shape: f32[1,32], index: 1, kind: input, shape index: {}]
  %s2 = inlined_call_operand.vmem [shape: f32[1,32], index: 2, kind: input, shape index: {}]
  %s3 = inlined_call_operand.hbm [shape: f32[2,32], index: 3, kind: output, shape index: {}]
  %s4 = sld [smem:[#allocation0]]
  $region26: #{geo_encoder_forward.1} parent=0
    _
  %s6 = ssub.s32 1, %s4
  %s7 = scalar_select 0, %s6, %s4
  $region1: #{geo_encoder_forward.1} parent=0
    #allocation2 [shape = 'u8[8192]{0}', space=vmem, size = 0x2000, scoped, tag = 'input window, operand 0, single buffered']
    #allocation3 [shape = 's32[1]{0}', space=sflag, size = 0x4, scoped, tag = 'scoped memory for geo_encoder_forward.1']
    #allocation4 [shape = 's32[1]{0}', space=sflag, size = 0x4, scoped, tag = 'scoped memory for geo_encoder_forward.1']
    #allocation5 [shape = 'u8[1024]{0}', space=vmem, size = 0x400, scoped, tag = 'output window, operand 0, single buffered']
    %8 = vsyncpa [#allocation3], 0
    %9 = vsyncpa [#allocation4], 0
    // Predicated region
    $region2: #{geo_encoder_forward.1} parent=1 // pred_check
      _
    $region3: #{geo_encoder_forward.1} parent=1 // pred_check_branch
      %11 = sbr.rel (0) target = $region5
    $region4: #{geo_encoder_forward.1} parent=1 // pred_region
      %s13 = ssub.s32 256, 256
      %14 = vsyncadd [#allocation3], %s13
      %s15 = sshll.u32 [#allocation2], 4
      %s16 = int_to_ptr.vmem [resolvable:$true] %s15
      %21 = dma.hbm_to_vmem [thread:$0]  %s0, 256, %s16, [#allocation3], 128, 128, 8
    $region5: #{geo_encoder_forward.1} parent=1 // pred_fallthru
      _
    // Predicated region
    $region6: #{geo_encoder_forward.1} parent=1 // pred_check
      _
    $region7: #{geo_encoder_forward.1} parent=1 // pred_check_branch
      %23 = sbr.rel (0) target = $region9
    $region8: #{geo_encoder_forward.1} parent=1 // pred_region
      _
    $region9: #{geo_encoder_forward.1} parent=1 // pred_fallthru
      _
    // Predicated region
    $region10: #{geo_encoder_forward.1} parent=1 // pred_check
      _
    $region11: #{geo_encoder_forward.1} parent=1 // pred_check_branch
      %25 = sbr.rel (0) target = $region13
    $region12: #{geo_encoder_forward.1} parent=1 // pred_region
      _
    $region13: #{geo_encoder_forward.1} parent=1 // pred_fallthru
      _
    // Predicated region
    $region14: #{geo_encoder_forward.1} parent=1 // pred_check
      _
    $region15: #{geo_encoder_forward.1} parent=1 // pred_check_branch
      %27 = sbr.rel (0) target = $region17
    $region16: #{geo_encoder_forward.1} parent=1 // pred_region
      %28 = dma.done [#allocation3], 256
    $region17: #{geo_encoder_forward.1} parent=1 // pred_fallthru
      _
    %v29 = vld [vmem:[#allocation2] sm:$0xff]
    %v30 = vld [vmem:[#allocation2 + $0x8] sm:$0xff]
    %vm31 = vcmask 261120
    %v32 = vsel %vm31, %v29, 0.0
    %v33 = vrot.slane %v32, 4
    %v34 = vadd.f32 %v32, %v33
    %v35 = vrot.slane %v34, 2
    %v36 = vadd.f32 %v34, %v35
    %v37 = vrot.slane %v36, 1
    %v38 = vadd.f32 %v36, %v37
    %v39 = vsel %vm31, %v30, 0.0
    %v40 = vrot.slane %v39, 4
    %v41 = vadd.f32 %v39, %v40
    %v42 = vrot.slane %v41, 2
    %v43 = vadd.f32 %v41, %v42
    %v44 = vrot.slane %v43, 1
    %v45 = vadd.f32 %v43, %v44
    %v46 = vrcp.pop 8.0
    %v47 = vmul.f32 %v38, %v46
    %v48 = vmul.f32 %v45, %v46
    %vm51 = vcmask 1041409
    %v52 = vsel %vm51, %v48, %v47
    %vm54 = vcmask 254976
    %v55 = vsel %vm54, %v52, 0.0
    %56 = vadd.xlane.f32.xlu0 %v55
    %v57 = vpop.xlane.xlu0 %56
    %v58 = vrcp.pop 32.0
    %v59 = vmul.f32 %v57, %v58
    %v61 = vrot.slane %v59, 1
    %v64 = vsub.f32 %v47, %v59
    %v65 = vsub.f32 %v48, %v61
    %v66 = vmul.f32 %v64, %v64
    %v67 = vmul.f32 %v65, %v65
    %v70 = vrot.slane %v67, 7
    %v71 = vsel %vm51, %v70, %v66
    %v73 = vsel %vm54, %v71, 0.0
    %74 = vadd.xlane.f32.xlu0 %v73
    %v75 = vpop.xlane.xlu0 %74
    %v76 = vmul.f32 %v75, %v58
    %v77 = vadd.f32 %v76, 1e-05
    %v78 = vrsqrt.pop %v77
    %v80 = vrot.slane %v78, 1
    %v83 = vmul.f32 %v64, %v78
    %v84 = vmul.f32 %v65, %v80
    %v85 = vld [vmem:[%s1] sm:$0x1]
    %v87 = vlaneseq
    %v88 = vshrl.u32 %v87, 7
    %v89 = vsub.s32 0, %v88
    %v90 = vrot.slane %v85, %v89
    %v92 = vmul.f32 %v83, %v90
    %v93 = vmul.f32 %v84, %v90
    %v94 = vld [vmem:[%s2] sm:$0x1]
    %v96 = vlaneseq
    %v97 = vshrl.u32 %v96, 7
    %v98 = vsub.s32 0, %v97
    %v99 = vrot.slane %v94, %v98
    %v101 = vadd.f32 %v92, %v99
    %v102 = vadd.f32 %v93, %v99
    %v105 = vrot.slane %v102, 7
    %v106 = vsel %vm51, %v105, %v101
    %108 = vst.msk [vmem:[#allocation5] sm:$0x3] %vm54, %v106
    // Predicated region
    $region18: #{geo_encoder_forward.1} parent=1 // pred_check
      _
    $region19: #{geo_encoder_forward.1} parent=1 // pred_check_branch
      %110 = sbr.rel (0) target = $region21
    $region20: #{geo_encoder_forward.1} parent=1 // pred_region
      %s112 = ssub.s32 32, 32
      %113 = vsyncadd [#allocation4], %s112
      %s115 = sshll.u32 [#allocation5], 4
      %s116 = int_to_ptr.vmem [resolvable:$true] %s115
      %118 = dma.vmem_to_hbm [thread:$0]  %s116, 32, %s3, [#allocation4]
    $region21: #{geo_encoder_forward.1} parent=1 // pred_fallthru
      _
    // Predicated region
    $region22: #{geo_encoder_forward.1} parent=1 // pred_check
      _
    $region23: #{geo_encoder_forward.1} parent=1 // pred_check_branch
      %120 = sbr.rel (0) target = $region25
    $region24: #{geo_encoder_forward.1} parent=1 // pred_region
      %121 = dma.done [#allocation4], 32
    $region25: #{geo_encoder_forward.1} parent=1 // pred_fallthru
      _
    %122 = vsyncpa [#allocation3], 1
    %123 = vsyncpa [#allocation4], 1

</llo_original>
